<compile_context>
chip_gen: v7x
topology: tpu7x:2x2x1
jax: 0.10.0
libtpu: 0.0.40
codegen_flags: <defaults>
</compile_context>

<pallas_src>
import math
import functools

import jax
import jax.numpy as jnp
from jax.experimental import pallas as pl
from jax.experimental.pallas import tpu as pltpu


# ----------------------- config (deterministic, in-script) -----------------
class Config:
    n_head = 4
    softmax_io_logging = False   # TODO(synk): host-side io logging / iter_num bookkeeping not ported
    softmax_io_log_interval = 1
    consmax_initial_beta = 2.5
    consmax_initial_gamma = 100.0
    consmax_use_euler_base = True
    consmax_base = 2.0


_LANES = 512                      # fixed lane-dense width
_TILE_BYTES = 8 * 1024 * 1024     # per-block byte budget (4-8 MiB sweet spot)
_VMEM_LIMIT = 48 * 1024 * 1024    # 2x in + 2x out buffers + headroom, <= v7x 64 MiB


# ----------------------------- Pallas kernel --------------------------------
def _consmax_kernel(params_ref, x_ref, o_ref, *, log_base):
    # params_ref: (2,) f32 in SMEM = [beta*ln(base), 1/gamma]
    # x_ref / o_ref: (TM, N) lane-dense VMEM tiles
    x = x_ref[...].astype(jnp.float32)
    if log_base != 1.0:           # ln(e) == 1.0 for the default config -> skip the multiply
        x = x * jnp.float32(log_base)
    y = jnp.exp(x - params_ref[0]) * params_ref[1]
    o_ref[...] = y.astype(o_ref.dtype)


def _tail_compute(x_f32, shift, inv_gamma, log_base, out_dtype):
    # Same math as the kernel, for the <512-element ragged tail.
    return (jnp.exp(x_f32 * jnp.float32(log_base) - shift) * inv_gamma).astype(out_dtype)


@functools.partial(jax.jit, static_argnums=(3,))
def _consmax_impl(x, beta, gamma, log_base):
    orig_shape = x.shape
    dtype = x.dtype
    total = int(x.size)

    shift = beta.reshape(()).astype(jnp.float32) * jnp.float32(log_base)
    inv_gamma = jnp.float32(1.0) / gamma.reshape(()).astype(jnp.float32)
    params = jnp.stack([shift, inv_gamma])          # (2,) f32 -> SMEM

    N = _LANES
    bulk = (total // N) * N
    tail = total - bulk

    flat = x.reshape(-1)
    pieces = []

    if bulk:
        M = bulk // N
        x2d = flat[:bulk].reshape(M, N)

        itemsize = jnp.dtype(dtype).itemsize
        sub = {4: 8, 2: 16, 1: 32}.get(itemsize, 8)          # sublane multiple per dtype
        max_rows = max(sub, ((_TILE_BYTES // (N * itemsize)) // sub) * sub)

        if M <= sub:
            tm = M                                            # single full-extent block
        else:
            # Aim for >= 2 grid steps so v7x can split the parallel axis
            # across both TensorCores, capped by the per-tile VMEM budget.
            target = ((pl.cdiv(M, 2) + sub - 1) // sub) * sub
            tm = min(max_rows, target)
        grid = (pl.cdiv(M, tm),)

        kernel = functools.partial(_consmax_kernel, log_base=log_base)
        out2d = pl.pallas_call(
            kernel,
            out_shape=jax.ShapeDtypeStruct((M, N), dtype),
            grid_spec=pltpu.PrefetchScalarGridSpec(
                num_scalar_prefetch=0,
                grid=grid,
                in_specs=[
                    pl.BlockSpec(memory_space=pltpu.MemorySpace.SMEM),  # params (2,)
                    pl.BlockSpec((tm, N), lambda i: (i, 0)),            # x row-tile
                ],
                out_specs=pl.BlockSpec((tm, N), lambda i: (i, 0)),
            ),
            compiler_params=pltpu.CompilerParams(
                dimension_semantics=("parallel",),
                vmem_limit_bytes=_VMEM_LIMIT,
            ),
        )(params, x2d)
        pieces.append(out2d.reshape(-1))

    if tail:
        tail_f32 = flat[bulk:].astype(jnp.float32)
        pieces.append(_tail_compute(tail_f32, shift, inv_gamma, log_base, dtype))

    out_flat = pieces[0] if len(pieces) == 1 else jnp.concatenate(pieces)
    return out_flat.reshape(orig_shape)


def consmax(x, beta, gamma, config: Config):
    """Elementwise ConSmax forward. x: any shape; beta/gamma: shape-(1,) params."""
    base = math.e if config.consmax_use_euler_base else float(config.consmax_base)
    return _consmax_impl(x, beta, gamma, math.log(base))


# ------------------------------ reference -----------------------------------
def ref_consmax(x, beta, gamma, config: Config):
    base = math.e if config.consmax_use_euler_base else float(config.consmax_base)
    x_adj = x.astype(jnp.float32) - beta.reshape(()).astype(jnp.float32)
    e_x = jnp.exp(x_adj * jnp.float32(math.log(base)))
    return (e_x / gamma.reshape(()).astype(jnp.float32)).astype(x.dtype)


# --------------------------------- main --------------------------------------
if __name__ == "__main__":
    cfg = Config()
    key = jax.random.PRNGKey(0)
    k1, k2, k3 = jax.random.split(key, 3)

    # Module init: nn.Parameter(torch.Tensor([initial_...])) -> scalar params.
    beta = jnp.array([cfg.consmax_initial_beta], jnp.float32)
    gamma = jnp.array([cfg.consmax_initial_gamma], jnp.float32)

    # Attention-logit-shaped input (B, n_head, T, T).
    B, H, T = 2, cfg.n_head, 16
    x = jax.random.normal(k1, (B, H, T, T), jnp.float32) * 3.0
    out = jax.block_until_ready(consmax(x, beta, gamma, cfg))
    assert out.shape == x.shape and out.dtype == x.dtype
    assert jnp.allclose(out, ref_consmax(x, beta, gamma, cfg), rtol=1e-5, atol=1e-5)

    # Larger T -> multi-step parallel grid (exercises row tiling / 2-step split).
    xb = jax.random.normal(k2, (B, H, 64, 64), jnp.float32) * 3.0
    outb = jax.block_until_ready(consmax(xb, beta, gamma, cfg))
    assert jnp.allclose(outb, ref_consmax(xb, beta, gamma, cfg), rtol=1e-5, atol=1e-5)

    # Ragged total (3*5*67 = 1005): kernel handles the 512-aligned bulk, jnp the tail.
    xr = jax.random.normal(k3, (3, 5, 67), jnp.float32)
    outr = jax.block_until_ready(consmax(xr, beta, gamma, cfg))
    assert jnp.allclose(outr, ref_consmax(xr, beta, gamma, cfg), rtol=1e-5, atol=1e-5)

    # Non-Euler base exercises the log_base != 1 multiply branch.
    class Cfg2(Config):
        consmax_use_euler_base = False
        consmax_base = 2.0
    cfg2 = Cfg2()
    out2 = jax.block_until_ready(consmax(x, beta, gamma, cfg2))
    assert jnp.allclose(out2, ref_consmax(x, beta, gamma, cfg2), rtol=1e-5, atol=1e-5)

    # bf16 I/O (math stays f32 inside the kernel).
    xh = x.astype(jnp.bfloat16)
    outh = jax.block_until_ready(consmax(xh, beta, gamma, cfg))
    assert outh.dtype == jnp.bfloat16
    assert jnp.allclose(outh.astype(jnp.float32),
                        ref_consmax(xh, beta, gamma, cfg).astype(jnp.float32),
                        rtol=2e-2, atol=2e-2)

    print("KERNEL_OK")
</pallas_src>

<mosaic_0001>
module attributes {stable_mosaic.version = 11 : i64} {
  func.func @_consmax_kernel(%arg0: i32, %arg1: memref<2xf32, #tpu.memory_space<smem>>, %arg2: memref<4x512xf32, #tpu.memory_space<vmem>>, %arg3: memref<4x512xf32, #tpu.memory_space<vmem>>) attributes {dimension_semantics = [#tpu.dimension_semantics<parallel>], iteration_bounds = array<i64: 1>, scalar_prefetch = 0 : i64, scratch_operands = 0 : i64, tpu.core_type = #tpu.core_type<tc>, window_params = [{transform_indices = @transform_0, window_bounds = array<i64: 2>}, {transform_indices = @transform_1, window_bounds = array<i64: 4, 512>}, {transform_indices = @transform_2, window_bounds = array<i64: 4, 512>}]} {
    %c0 = arith.constant 0 : index
    %c0_0 = arith.constant 0 : index
    %0 = vector.load %arg2[%c0, %c0_0] : memref<4x512xf32, #tpu.memory_space<vmem>>, vector<4x512xf32>
    %c0_1 = arith.constant 0 : index
    %1 = memref.load %arg1[%c0_1] : memref<2xf32, #tpu.memory_space<smem>>
    %2 = vector.broadcast %1 : f32 to vector<4x512xf32>
    %3 = arith.subf %0, %2 : vector<4x512xf32>
    %4 = math.exp %3 : vector<4x512xf32>
    %c1 = arith.constant 1 : index
    %5 = memref.load %arg1[%c1] : memref<2xf32, #tpu.memory_space<smem>>
    %6 = vector.broadcast %5 : f32 to vector<4x512xf32>
    %7 = arith.mulf %4, %6 : vector<4x512xf32>
    %c0_2 = arith.constant 0 : index
    %c0_3 = arith.constant 0 : index
    %8 = vector.load %arg3[%c0_2, %c0_3] : memref<4x512xf32, #tpu.memory_space<vmem>>, vector<4x512xf32>
    tpu.vector_store %arg3[%c0_2, %c0_3], %7 {strides = array<i32>} : memref<4x512xf32, #tpu.memory_space<vmem>>, vector<4x512xf32>,
    return
  }
  func.func @transform_0(%arg0: i32) -> i32 {
    %c0_i32 = arith.constant 0 : i32
    %c0_i32_0 = arith.constant 0 : i32
    return %c0_i32 : i32
  }
  func.func @transform_1(%arg0: i32) -> (i32, i32) {
    %c0_i32 = arith.constant 0 : i32
    %c0_i32_0 = arith.constant 0 : i32
    return %arg0, %c0_i32 : i32, i32
  }
  func.func @transform_2(%arg0: i32) -> (i32, i32) {
    %c0_i32 = arith.constant 0 : i32
    %c0_i32_0 = arith.constant 0 : i32
    return %arg0, %c0_i32 : i32, i32
  }
}

</mosaic_0001>

<llo_original>
// kernel: _consmax_impl.1
$region0: #{_consmax_impl.1}
  #allocation0 [shape = 'u32[]', space=smem, size = 0x4, offset = 0x4, fixed_abs, tag = 'smem constant byte address 0x4 - core index']
  #allocation1 [shape = 'u32[144,128]{1,0:T(1,128)}', space=vmem, size = 0x12000, scoped, tag = 'internal scratch']
  %s0 = inlined_call_operand.vmem [shape: f32[2], index: 0, kind: input, shape index: {}]
  %s1 = inlined_call_operand.vmem [shape: f32[4,512], index: 1, kind: input, shape index: {}]
  %s2 = inlined_call_operand.vmem [shape: f32[4,512], index: 2, kind: output, shape index: {}]
  %s3 = sld [smem:[#allocation0]]
  $region22: #{_consmax_impl.1} parent=0
    _
  %s5 = ssub.s32 1, %s3
  %s6 = scalar_select 0, %s5, %s3
  $region1: #{_consmax_impl.1} parent=0
    #allocation2 [shape = 'u8[512]{0}', space=smem, size = 0x200, scoped, tag = 'input window, operand 0, single buffered']
    #allocation3 [shape = 's32[1]{0}', space=sflag, size = 0x4, scoped, tag = 'scoped memory for _consmax_impl.1']
    %7 = vsyncpa [#allocation3], 0
    // Predicated region
    $region2: #{_consmax_impl.1} parent=1 // pred_check
      _
    $region3: #{_consmax_impl.1} parent=1 // pred_check_branch
      %9 = sbr.rel (0) target = $region5
    $region4: #{_consmax_impl.1} parent=1 // pred_region
      %s11 = ssub.s32 16, 16
      %12 = vsyncadd [#allocation3], %s11
      %s14 = sshll.u32 %s0, 4
      %s15 = int_to_ptr.vmem [resolvable:$true] %s14
      %17 = dma.vmem_to_smem %s15, 16, [#allocation2], [#allocation3]
    $region5: #{_consmax_impl.1} parent=1 // pred_fallthru
      _
    // Predicated region
    $region6: #{_consmax_impl.1} parent=1 // pred_check
      _
    $region7: #{_consmax_impl.1} parent=1 // pred_check_branch
      %19 = sbr.rel (0) target = $region9
    $region8: #{_consmax_impl.1} parent=1 // pred_region
      _
    $region9: #{_consmax_impl.1} parent=1 // pred_fallthru
      _
    // Predicated region
    $region10: #{_consmax_impl.1} parent=1 // pred_check
      _
    $region11: #{_consmax_impl.1} parent=1 // pred_check_branch
      %21 = sbr.rel (0) target = $region13
    $region12: #{_consmax_impl.1} parent=1 // pred_region
      %22 = dma.done [#allocation3], 16
    $region13: #{_consmax_impl.1} parent=1 // pred_fallthru
      _
    %23 = sfence
    %v24 = vld [vmem:[%s1] sm:$0xff]
    %v25 = vld [vmem:[%s1 + $0x8] sm:$0xff]
    %s26 = sld [smem:[#allocation2]]
    %v27 = vstv %s26
    %v28 = vsub.f32 %v24, %v27
    %v29 = vsub.f32 %v25, %v27
    %v30 = vmul.f32 %v28, 1.442695
    %v31 = vpow.pop %v30
    %v32 = vmul.f32 %v29, 1.442695
    %v33 = vpow.pop %v32
    %s34 = sld [smem:[#allocation2 + $0x1]]
    %v35 = vstv %s34
    %v36 = vmul.f32 %v31, %v35
    %v37 = vmul.f32 %v33, %v35
    %38 = vst [vmem:[%s2] sm:$0xff] %v36
    %39 = vst [vmem:[%s2 + $0x8] sm:$0xff] %v37
    // Predicated region
    $region14: #{_consmax_impl.1} parent=1 // pred_check
      _
    $region15: #{_consmax_impl.1} parent=1 // pred_check_branch
      %41 = sbr.rel (0) target = $region17
    $region16: #{_consmax_impl.1} parent=1 // pred_region
      _
    $region17: #{_consmax_impl.1} parent=1 // pred_fallthru
      _
    // Predicated region
    $region18: #{_consmax_impl.1} parent=1 // pred_check
      _
    $region19: #{_consmax_impl.1} parent=1 // pred_check_branch
      %43 = sbr.rel (0) target = $region21
    $region20: #{_consmax_impl.1} parent=1 // pred_region
      _
    $region21: #{_consmax_impl.1} parent=1 // pred_fallthru
      _
    %44 = vsyncpa [#allocation3], 1

</llo_original>
